<compile_context>
chip_gen: v7x
topology: tpu7x:2x2x1
jax: 0.10.0
libtpu: 0.0.40
codegen_flags: <defaults>
</compile_context>

<pallas_src>
import functools
import math

import jax
import jax.numpy as jnp
from jax.experimental import pallas as pl
from jax.experimental.pallas import tpu as pltpu


_TARGET_TILE_BYTES = 8 << 20     # ~8 MiB row tiles (amortize per-step overhead)
_MAX_LANE_ELEMS = 65536          # cap on packed row width (elements)


# ----------------------------- helpers ------------------------------------- #

def _pick_block_rows(nrows, ncols, itemsize, target_bytes=_TARGET_TILE_BYTES):
    """Row-tile of ~target_bytes. Sublane(8)-aligned; prefers a tile that
    divides nrows exactly (no masked partial tile) and gives an even tile
    count (so the 'parallel' batch axis splits evenly across 2 TCs on v7x)."""
    max_tb = (target_bytes // max(1, ncols * itemsize)) // 8 * 8
    max_tb = max(8, max_tb)
    if max_tb >= nrows:
        return nrows                       # full extent: always a legal block dim
    lo = max(8, max_tb // 2)               # never shrink the tile below half target
    best_exact = None
    for cand in range(max_tb, lo - 1, -8):
        if nrows % cand == 0:
            if best_exact is None:
                best_exact = cand
            if (nrows // cand) % 2 == 0:
                return cand                # exact divisor AND even tile count
    if best_exact is not None:
        return best_exact                  # exact divisor (odd tile count)
    return max_tb                          # partial last tile (masked where needed)


def _lane_pack_factor(B, D):
    """Pack factor P so (B, D) -> (B // P, D * P) has a lane width that is a
    (large) multiple of 128. Generalized to any D via lcm(D, 128)."""
    base = math.lcm(D, 128) // D           # minimal P making D*P a multiple of 128
    if base > 1 and B % base != 0:
        return 1                           # fallback: full-D rows (still legal)
    P = max(1, base)
    # Widen further while it still divides B, keeps >= 8 packed rows and the
    # row stays a modest width (fewer DMA descriptors per byte of HBM traffic).
    while (B % (2 * P) == 0 and B // (2 * P) >= 8 and 2 * P * D <= _MAX_LANE_ELEMS):
        P *= 2
    return P


def _vmem_limit(*buffer_bytes):
    """Explicit scoped-VMEM budget: actual pipeline footprint + headroom."""
    need = int(sum(buffer_bytes)) + (4 << 20)
    return max(need, 16 << 20)


# ----------------------------- kernels ------------------------------------- #

def actnorm_apply_kernel(x_ref, p_ref, z_ref):
    """z = x * scale + bias. p_ref is (2, L): row 0 = bias, row 1 = scale.
    Inverse mode is folded wrapper-side (scale=exp(-ls), bias=-mu*exp(-ls))."""
    bias = p_ref[0:1, :]
    scale = p_ref[1:2, :]
    x = x_ref[...].astype(scale.dtype)
    z_ref[...] = (x * scale + bias).astype(z_ref.dtype)


def actnorm_sum_kernel(x_ref, sum_ref, *, nrows, block_rows, exact):
    """Pass 1 of init: accumulate per-lane column sums into the (1, L) output."""
    pid = pl.program_id(0)

    @pl.when(pid == 0)
    def _():
        sum_ref[...] = jnp.zeros_like(sum_ref)

    x = x_ref[...].astype(jnp.float32)
    if exact:                                   # static: no mask at all
        sum_ref[...] += jnp.sum(x, axis=0, keepdims=True)
    else:
        last = pl.num_programs(0) - 1

        @pl.when(pid != last)
        def _():
            sum_ref[...] += jnp.sum(x, axis=0, keepdims=True)

        @pl.when(pid == last)                   # mask only the partial tile
        def _():
            rows = jax.lax.broadcasted_iota(jnp.int32, x.shape, 0) + pid * block_rows
            xm = jnp.where(rows < nrows, x, 0.0)
            sum_ref[...] += jnp.sum(xm, axis=0, keepdims=True)


def actnorm_sumsq_kernel(x_ref, mu_ref, sumsq_ref, *, nrows, block_rows, exact):
    """Pass 2 of init: accumulate per-lane sums of (x + mu)^2 (centered, two-pass)."""
    pid = pl.program_id(0)

    @pl.when(pid == 0)
    def _():
        sumsq_ref[...] = jnp.zeros_like(sumsq_ref)

    y = x_ref[...].astype(jnp.float32) + mu_ref[...]
    if exact:
        sumsq_ref[...] += jnp.sum(y * y, axis=0, keepdims=True)
    else:
        last = pl.num_programs(0) - 1

        @pl.when(pid != last)
        def _():
            sumsq_ref[...] += jnp.sum(y * y, axis=0, keepdims=True)

        @pl.when(pid == last)
        def _():
            rows = jax.lax.broadcasted_iota(jnp.int32, y.shape, 0) + pid * block_rows
            ym = jnp.where(rows < nrows, y, 0.0)
            sumsq_ref[...] += jnp.sum(ym * ym, axis=0, keepdims=True)


# ----------------------------- wrappers ------------------------------------ #

def actnorm_initialize(x):
    """Data-dependent init. x: (B, D) -> (mu, log_sigma), each (D,) float32.
    Two-pass (mean, then centered sum of squares) for numerical robustness."""
    B, D = x.shape
    P = _lane_pack_factor(B, D)
    xp = x.reshape(B // P, D * P)
    Bp, L = xp.shape
    itemsize = jnp.dtype(x.dtype).itemsize
    tb = _pick_block_rows(Bp, L, itemsize)
    grid = (pl.cdiv(Bp, tb),)
    exact = (Bp % tb == 0)
    vmem_limit = _vmem_limit(2 * tb * L * itemsize, 8 * L * 4)
    cparams = pltpu.CompilerParams(dimension_semantics=("arbitrary",),
                                   vmem_limit_bytes=vmem_limit)
    static = dict(nrows=Bp, block_rows=tb, exact=exact)

    # Pass 1: per-feature sum -> mean -> mu = -mean.
    col_sum = pl.pallas_call(
        functools.partial(actnorm_sum_kernel, **static),
        out_shape=jax.ShapeDtypeStruct((1, L), jnp.float32),
        grid_spec=pltpu.PrefetchScalarGridSpec(
            num_scalar_prefetch=0,
            grid=grid,
            in_specs=[pl.BlockSpec((tb, L), lambda i: (i, 0))],
            out_specs=pl.BlockSpec((1, L), lambda i: (0, 0)),
        ),
        compiler_params=cparams,
    )(xp)
    mu = -(col_sum.reshape(P, D).sum(axis=0) / B)            # (D,) == -mean(x)

    # Pass 2: centered sum of squares using the exact mean (no cancellation).
    mu_tiled = jnp.tile(mu.reshape(1, D), (1, P)).astype(jnp.float32)   # (1, L)
    col_sumsq = pl.pallas_call(
        functools.partial(actnorm_sumsq_kernel, **static),
        out_shape=jax.ShapeDtypeStruct((1, L), jnp.float32),
        grid_spec=pltpu.PrefetchScalarGridSpec(
            num_scalar_prefetch=0,
            grid=grid,
            in_specs=[pl.BlockSpec((tb, L), lambda i: (i, 0)),
                      pl.BlockSpec((1, L), lambda i: (0, 0))],
            out_specs=pl.BlockSpec((1, L), lambda i: (0, 0)),
        ),
        compiler_params=cparams,
    )(xp, mu_tiled)
    var = col_sumsq.reshape(P, D).sum(axis=0) / B
    log_sigma = jnp.log(1.0 / (jnp.sqrt(var) + 1e-6))
    return mu, log_sigma


def actnorm_forward(x, mu, log_sigma, inverse=False):
    """Apply ActNorm. Returns (z, log_det); log_det is an f32 scalar."""
    B, D = x.shape
    mu2 = mu.reshape(1, D).astype(jnp.float32)
    ls2 = log_sigma.reshape(1, D).astype(jnp.float32)

    # log_det depends only on log_sigma -> wrapper-side, outside the kernel.
    log_det = -jnp.sum(ls2) if inverse else jnp.sum(ls2)

    # Fold both directions into one FMA: z = x * scale + bias.
    if inverse:
        scale = jnp.exp(-ls2)
        bias = -mu2 * scale
    else:
        scale = jnp.exp(ls2)
        bias = mu2

    # bf16 inputs compute in bf16 (v6e/v7x native VPU); everything else in f32.
    pdtype = jnp.bfloat16 if x.dtype == jnp.bfloat16 else jnp.float32

    # Lane-dense packing: (B, D) -> (B/P, D*P) with D*P a multiple of 128.
    P = _lane_pack_factor(B, D)
    xp = x.reshape(B // P, D * P)
    Bp, L = xp.shape
    params = jnp.concatenate(
        [jnp.tile(bias, (1, P)), jnp.tile(scale, (1, P))], axis=0).astype(pdtype)

    itemsize = jnp.dtype(x.dtype).itemsize
    tb = _pick_block_rows(Bp, L, itemsize)
    grid = (pl.cdiv(Bp, tb),)
    tile_bytes = tb * L * itemsize
    param_bytes = 2 * L * jnp.dtype(pdtype).itemsize
    vmem_limit = _vmem_limit(2 * tile_bytes,      # x: double-buffered input
                             2 * tile_bytes,      # z: double-buffered output
                             2 * param_bytes)     # stacked bias/scale

    z = pl.pallas_call(
        actnorm_apply_kernel,
        out_shape=jax.ShapeDtypeStruct((Bp, L), x.dtype),
        grid_spec=pltpu.PrefetchScalarGridSpec(
            num_scalar_prefetch=0,
            grid=grid,
            in_specs=[
                pl.BlockSpec((tb, L), lambda i: (i, 0)),   # x tile (pipelined)
                pl.BlockSpec((2, L), lambda i: (0, 0)),    # bias/scale (resident)
            ],
            out_specs=pl.BlockSpec((tb, L), lambda i: (i, 0)),
        ),
        compiler_params=pltpu.CompilerParams(
            dimension_semantics=("parallel",),             # dual-TC split on v7x
            vmem_limit_bytes=vmem_limit),
    )(xp, params)
    return z.reshape(B, D), log_det


# ----------------------------- reference ----------------------------------- #

def actnorm_ref(x, mu, log_sigma, inverse=False):
    mu = mu.reshape(1, -1)
    log_sigma = log_sigma.reshape(1, -1)
    if not inverse:
        return x * jnp.exp(log_sigma) + mu, jnp.sum(log_sigma)
    return (x - mu) / jnp.exp(log_sigma), -jnp.sum(log_sigma)


def actnorm_init_ref(x):
    mu = -jnp.mean(x, axis=0)
    var = jnp.mean((x + mu[None, :]) ** 2, axis=0)
    log_sigma = jnp.log(1.0 / (jnp.sqrt(var) + 1e-6))
    return mu, log_sigma


# ------------------------------- main -------------------------------------- #

if __name__ == "__main__":
    key = jax.random.PRNGKey(0)
    B, D = 8, 32                       # n_param = 32 features, batch of 8
    x = jax.random.normal(key, (B, D), dtype=jnp.float32) * 2.0 + 0.5

    # Module __init__ parameters are zeros; the first forward call in train
    # mode triggers data-dependent initialization, reproduced in-kernel here.
    mu, log_sigma = actnorm_initialize(x)
    mu = jax.block_until_ready(mu)
    log_sigma = jax.block_until_ready(log_sigma)

    mu_ref, ls_ref = actnorm_init_ref(x)
    assert jnp.allclose(mu, mu_ref, atol=1e-4, rtol=1e-4)
    assert jnp.allclose(log_sigma, ls_ref, atol=1e-4, rtol=1e-4)

    # Forward pass
    z, log_det = actnorm_forward(x, mu, log_sigma, inverse=False)
    z = jax.block_until_ready(z)
    log_det = jax.block_until_ready(log_det)
    z_ref, ld_ref = actnorm_ref(x, mu, log_sigma, inverse=False)
    assert jnp.allclose(z, z_ref, atol=1e-5, rtol=1e-5)
    assert jnp.allclose(log_det, ld_ref, atol=1e-5, rtol=1e-5)

    # Inverse pass (should recover x up to numerics)
    x_rec, log_det_inv = actnorm_forward(z, mu, log_sigma, inverse=True)
    x_rec = jax.block_until_ready(x_rec)
    log_det_inv = jax.block_until_ready(log_det_inv)
    assert jnp.allclose(x_rec, x, atol=1e-4, rtol=1e-4)
    assert jnp.allclose(log_det_inv, -ld_ref, atol=1e-5, rtol=1e-5)

    print("KERNEL_OK")
</pallas_src>

<mosaic_0001>
module attributes {stable_mosaic.version = 11 : i64} {
  func.func @actnorm_sum_kernel(%arg0: i32, %arg1: memref<2x128xf32, #tpu.memory_space<vmem>>, %arg2: memref<1x128xf32, #tpu.memory_space<vmem>>) attributes {dimension_semantics = [#tpu.dimension_semantics<arbitrary>], iteration_bounds = array<i64: 1>, scalar_prefetch = 0 : i64, scratch_operands = 0 : i64, tpu.core_type = #tpu.core_type<tc>, window_params = [{transform_indices = @transform_0, window_bounds = array<i64: 2, 128>}, {pipeline_mode = #tpu.pipeline_mode<synchronous>, transform_indices = @transform_1, window_bounds = array<i64: 1, 128>}]} {
    %c0_i32 = arith.constant 0 : i32
    %0 = arith.cmpi eq, %arg0, %c0_i32 : i32
    %1 = arith.extui %0 : i1 to i32
    %c0_i32_0 = arith.constant 0 : i32
    %2 = arith.cmpi ne, %1, %c0_i32_0 : i32
    scf.if %2 {
      %cst_6 = arith.constant 0.000000e+00 : f32
      %9 = vector.broadcast %cst_6 : f32 to vector<1x128xf32>
      %c0_7 = arith.constant 0 : index
      %c0_8 = arith.constant 0 : index
      %10 = vector.load %arg2[%c0_7, %c0_8] : memref<1x128xf32, #tpu.memory_space<vmem>>, vector<1x128xf32>
      tpu.vector_store %arg2[%c0_7, %c0_8], %9 {strides = array<i32>} : memref<1x128xf32, #tpu.memory_space<vmem>>, vector<1x128xf32>,
    } else {
    }
    %c0 = arith.constant 0 : index
    %c0_1 = arith.constant 0 : index
    %3 = vector.load %arg1[%c0, %c0_1] : memref<2x128xf32, #tpu.memory_space<vmem>>, vector<2x128xf32>
    %c0_2 = arith.constant 0 : index
    %c0_3 = arith.constant 0 : index
    %4 = vector.load %arg2[%c0_2, %c0_3] : memref<1x128xf32, #tpu.memory_space<vmem>>, vector<1x128xf32>
    %cst = arith.constant dense<0.000000e+00> : vector<128xf32>
    %5 = vector.multi_reduction <add>, %3, %cst [0] : vector<2x128xf32> to vector<128xf32>
    %6 = vector.shape_cast %5 : vector<128xf32> to vector<1x128xf32>
    %7 = arith.addf %4, %6 : vector<1x128xf32>
    %c0_4 = arith.constant 0 : index
    %c0_5 = arith.constant 0 : index
    %8 = vector.load %arg2[%c0_4, %c0_5] : memref<1x128xf32, #tpu.memory_space<vmem>>, vector<1x128xf32>
    tpu.vector_store %arg2[%c0_4, %c0_5], %7 {strides = array<i32>} : memref<1x128xf32, #tpu.memory_space<vmem>>, vector<1x128xf32>,
    return
  }
  func.func @transform_0(%arg0: i32) -> (i32, i32) {
    %c0_i32 = arith.constant 0 : i32
    %c0_i32_0 = arith.constant 0 : i32
    return %arg0, %c0_i32 : i32, i32
  }
  func.func @transform_1(%arg0: i32) -> (i32, i32) {
    %c0_i32 = arith.constant 0 : i32
    %c0_i32_0 = arith.constant 0 : i32
    %c0_i32_1 = arith.constant 0 : i32
    return %c0_i32, %c0_i32_0 : i32, i32
  }
}

</mosaic_0001>

<llo_original>
// kernel: tpu_custom_call.1
$region0: #{tpu_custom_call.1}
  #allocation0 [shape = 'u32[]', space=smem, size = 0x4, offset = 0x4, fixed_abs, tag = 'smem constant byte address 0x4 - core index']
  #allocation1 [shape = 'u32[144,128]{1,0:T(1,128)}', space=vmem, size = 0x12000, scoped, tag = 'internal scratch']
  %s0 = inlined_call_operand.hbm [shape: f32[2,128], index: 0, kind: input, shape index: {}]
  %s1 = inlined_call_operand.hbm [shape: f32[1,128], index: 1, kind: output, shape index: {}]
  %s2 = sld [smem:[#allocation0]]
  $region22: #{tpu_custom_call.1} parent=0
    _
  %s4 = ssub.s32 1, %s2
  %s5 = scalar_select 0, %s4, %s2
  $region1: #{tpu_custom_call.1} parent=0
    #allocation2 [shape = 'u8[1024]{0}', space=vmem, size = 0x400, scoped, tag = 'input window, operand 0, single buffered']
    #allocation3 [shape = 's32[1]{0}', space=sflag, size = 0x4, scoped, tag = 'scoped memory for tpu_custom_call.1']
    #allocation4 [shape = 's32[1]{0}', space=sflag, size = 0x4, scoped, tag = 'scoped memory for tpu_custom_call.1']
    #allocation5 [shape = 'u8[512]{0}', space=vmem, size = 0x400, scoped, tag = 'output window, operand 0, single buffered']
    %6 = vsyncpa [#allocation3], 0
    %7 = vsyncpa [#allocation4], 0
    // Predicated region
    $region2: #{tpu_custom_call.1} parent=1 // pred_check
      _
    $region3: #{tpu_custom_call.1} parent=1 // pred_check_branch
      %9 = sbr.rel (0) target = $region5
    $region4: #{tpu_custom_call.1} parent=1 // pred_region
      %s11 = ssub.s32 32, 32
      %12 = vsyncadd [#allocation3], %s11
      %s14 = sshll.u32 [#allocation2], 4
      %s15 = int_to_ptr.vmem [resolvable:$true] %s14
      %17 = dma.hbm_to_vmem [thread:$0]  %s0, 32, %s15, [#allocation3]
    $region5: #{tpu_custom_call.1} parent=1 // pred_fallthru
      _
    // Predicated region
    $region6: #{tpu_custom_call.1} parent=1 // pred_check
      _
    $region7: #{tpu_custom_call.1} parent=1 // pred_check_branch
      %19 = sbr.rel (0) target = $region9
    $region8: #{tpu_custom_call.1} parent=1 // pred_region
      %20 = dma.done [#allocation3], 32
    $region9: #{tpu_custom_call.1} parent=1 // pred_fallthru
      _
    %p21 = scmp.eq.s32.totalorder 0, 0
    // Predicated region
    $region10: #{tpu_custom_call.1} parent=1 // pred_check
      %p22 = pneg %p21
    $region11: #{tpu_custom_call.1} parent=1 // pred_check_branch
      %24 = sbr.rel (%p22) target = $region13
    $region12: #{tpu_custom_call.1} parent=1 // pred_region
      %25 = vst [vmem:[#allocation5] sm:$0x1] 0.0
    $region13: #{tpu_custom_call.1} parent=1 // pred_fallthru
      _
    %v26 = vld [vmem:[#allocation2] sm:$0x3]
    %v27 = vld [vmem:[#allocation5] sm:$0x1]
    %vm28 = vcmask 1041408
    %v29 = vsel %vm28, %v26, 0.0
    %v30 = vrot.slane %v29, 4
    %v31 = vadd.f32 %v29, %v30
    %v32 = vrot.slane %v31, 2
    %v33 = vadd.f32 %v31, %v32
    %v34 = vrot.slane %v33, 1
    %v35 = vadd.f32 %v33, %v34
    %v36 = vadd.f32 %v27, %v35
    %37 = vst [vmem:[#allocation5] sm:$0x1] %v36
    // Predicated region
    $region14: #{tpu_custom_call.1} parent=1 // pred_check
      _
    $region15: #{tpu_custom_call.1} parent=1 // pred_check_branch
      %39 = sbr.rel (0) target = $region17
    $region16: #{tpu_custom_call.1} parent=1 // pred_region
      %s41 = ssub.s32 16, 16
      %42 = vsyncadd [#allocation4], %s41
      %s44 = sshll.u32 [#allocation5], 4
      %s45 = int_to_ptr.vmem [resolvable:$true] %s44
      %47 = dma.vmem_to_hbm [thread:$0]  %s45, 16, %s1, [#allocation4]
    $region17: #{tpu_custom_call.1} parent=1 // pred_fallthru
      _
    // Predicated region
    $region18: #{tpu_custom_call.1} parent=1 // pred_check
      _
    $region19: #{tpu_custom_call.1} parent=1 // pred_check_branch
      %49 = sbr.rel (0) target = $region21
    $region20: #{tpu_custom_call.1} parent=1 // pred_region
      %50 = dma.done [#allocation4], 16
    $region21: #{tpu_custom_call.1} parent=1 // pred_fallthru
      _
    %51 = vsyncpa [#allocation3], 1
    %52 = vsyncpa [#allocation4], 1

</llo_original>
